<compile_context>
chip_gen: v5e
topology: v5e:2x2
jax: 0.10.0
libtpu: 0.0.40
codegen_flags: <defaults>
</compile_context>

<pallas_src>
import functools

import jax
import jax.numpy as jnp
from jax import lax
from jax.experimental import pallas as pl
from jax.experimental.pallas import tpu as pltpu


def _hgcn_fused_kernel(adj_ref, embs_ref, o_ref, t_ref, *, leaky):
    """2-phase fused kernel.

    phase 0 (p == 0): t_ref += adj_tile^T @ embs_tile   (reduce over row tiles)
    phase 1 (p == 1): o_ref  = act(adj_tile @ t_ref)     (t resident in VMEM)
    """
    p = pl.program_id(0)
    r = pl.program_id(1)

    @pl.when((p == 0) & (r == 0))
    def _():
        t_ref[...] = jnp.zeros_like(t_ref)

    @pl.when(p == 0)
    def _():
        # adj.T @ embs without materializing the transpose: contract dim 0 of
        # both tiles; the MXU handles the transposed-LHS contraction in-tile.
        t_ref[...] += lax.dot_general(
            adj_ref[...],
            embs_ref[...],
            dimension_numbers=(((0,), (0,)), ((), ())),
            preferred_element_type=jnp.float32,
        )

    @pl.when(p == 1)
    def _():
        # Near-f32-accurate second matmul at bf16 MXU rate: split the f32
        # accumulator t into a bf16 hi/lo pair (adj is {0,1}, exact in bf16),
        # do two bf16 matmuls with f32 accumulation.
        t = t_ref[...]
        t_hi = t.astype(jnp.bfloat16)
        t_lo = (t - t_hi.astype(jnp.float32)).astype(jnp.bfloat16)
        a = adj_ref[...].astype(jnp.bfloat16)
        acc = jnp.dot(a, t_hi, preferred_element_type=jnp.float32)
        acc += jnp.dot(a, t_lo, preferred_element_type=jnp.float32)
        if leaky is not None:
            acc = jnp.where(acc >= 0, acc, leaky * acc)
        o_ref[...] = acc.astype(o_ref.dtype)


def _round_up(x, m):
    return (x + m - 1) // m * m


def _pick_row_tile(n, max_tile=512):
    """Row tile: up to `max_tile`, 8-aligned (N is padded up to a multiple)."""
    if n <= max_tile:
        return _round_up(n, 8)
    return max_tile


def hgcn_conv(adj, embs, *, leaky=0.5, act=True, row_tile=None,
              compute_dtype=jnp.bfloat16, out_dtype=jnp.float32):
    """HGCNConv.forward: adj @ (adj.T @ embs), optional LeakyReLU (fused)."""
    N, M = adj.shape
    N2, D = embs.shape
    assert N == N2, (adj.shape, embs.shape)

    adj = adj.astype(compute_dtype)
    embs = embs.astype(compute_dtype)

    tr = _pick_row_tile(N) if row_tile is None else row_tile
    assert tr % 8 == 0, tr

    # Zero-pad ragged N: zero adj rows add nothing to t, padded output rows
    # are sliced off below.
    n_pad = _round_up(N, tr)
    if n_pad != N:
        adj = jnp.pad(adj, ((0, n_pad - N), (0, 0)))
        embs = jnp.pad(embs, ((0, n_pad - N), (0, 0)))
    num_row_tiles = n_pad // tr

    # VMEM footprint: resident t + double-buffered row tiles of adj/embs/out.
    in_itemsize = jnp.dtype(compute_dtype).itemsize
    t_bytes = M * D * 4
    buf_bytes = (2 * tr * M * in_itemsize
                 + 2 * tr * D * in_itemsize
                 + 2 * tr * D * jnp.dtype(out_dtype).itemsize)
    assert t_bytes <= 24 * 1024 * 1024, "t (M x D) too large to keep resident"
    vmem_limit = int(min(max(2 * (t_bytes + buf_bytes), 16 << 20), 64 << 20))

    kernel = functools.partial(
        _hgcn_fused_kernel, leaky=(leaky if act else None))

    out = pl.pallas_call(
        kernel,
        out_shape=jax.ShapeDtypeStruct((n_pad, D), out_dtype),
        grid_spec=pltpu.PrefetchScalarGridSpec(
            num_scalar_prefetch=0,
            grid=(2, num_row_tiles),          # (phase, row tile), phase-major
            in_specs=[
                # adj row tile, streamed in both phases.
                pl.BlockSpec((tr, M), lambda p, r: (r, 0)),
                # embs row tile; pinned to block 0 during phase 1 (unused
                # there) so it is fetched at most once in that phase.
                pl.BlockSpec((tr, D), lambda p, r: (r * (1 - p), 0)),
            ],
            # Output pinned to block 0 during phase 0 (never written there),
            # so no garbage tile is ever flushed to HBM; each output block is
            # visited consecutively and written exactly once in phase 1.
            out_specs=pl.BlockSpec((tr, D), lambda p, r: (r * p, 0)),
            scratch_shapes=[pltpu.VMEM((M, D), jnp.float32)],
        ),
        compiler_params=pltpu.CompilerParams(
            # The VMEM-resident t is carried across both grid axes and phase
            # order matters -> both axes must be sequential.
            dimension_semantics=("arbitrary", "arbitrary"),
            vmem_limit_bytes=vmem_limit,
        ),
    )(adj, embs)

    if n_pad != N:
        out = out[:N]
    return out


def _reference(adj, embs, leaky, act):
    out = adj @ (adj.T @ embs)
    if act:
        out = jnp.where(out >= 0, out, leaky * out)
    return out


if __name__ == "__main__":
    key = jax.random.PRNGKey(0)
    k_adj, k_emb, k_adj2, k_emb2 = jax.random.split(key, 4)

    N, M, D = 256, 128, 128          # nodes, hyperedges, embedding dim
    leaky = 0.5                      # LeakyReLU negative_slope

    # Deterministic "sparse" adjacency: random 0/1 incidence matrix (dense).
    adj = (jax.random.uniform(k_adj, (N, M)) < 0.05).astype(jnp.float32)
    embs = jax.random.normal(k_emb, (N, D), dtype=jnp.float32)

    # row_tile=64 -> grid (2, 4): exercises multi-tile accumulation of t and
    # multiple streamed output tiles.
    out = jax.block_until_ready(
        hgcn_conv(adj, embs, leaky=leaky, act=True, row_tile=64))
    out_noact = jax.block_until_ready(
        hgcn_conv(adj, embs, leaky=leaky, act=False, row_tile=64))

    # Reference uses the same bf16-rounded inputs (adj is exact in bf16), so
    # the only differences vs. the kernel are f32 accumulation order and the
    # bf16 hi/lo split of t (error ~1e-5 relative).
    adj_c = adj.astype(jnp.bfloat16).astype(jnp.float32)
    embs_c = embs.astype(jnp.bfloat16).astype(jnp.float32)
    ref = _reference(adj_c, embs_c, leaky, act=True)
    ref_noact = _reference(adj_c, embs_c, leaky, act=False)

    assert out.shape == (N, D)
    assert jnp.allclose(out, ref, atol=2e-3, rtol=2e-3), \
        "mismatch vs reference (act=True)"
    assert jnp.allclose(out_noact, ref_noact, atol=2e-3, rtol=2e-3), \
        "mismatch vs reference (act=False)"

    # Ragged-N case: exercises the zero-padding path (N not a tile multiple).
    N2, M2 = 200, 96
    adj2 = (jax.random.uniform(k_adj2, (N2, M2)) < 0.05).astype(jnp.float32)
    embs2 = jax.random.normal(k_emb2, (N2, D), dtype=jnp.float32)
    out2 = jax.block_until_ready(
        hgcn_conv(adj2, embs2, leaky=leaky, act=True, row_tile=64))
    ref2 = _reference(adj2.astype(jnp.bfloat16).astype(jnp.float32),
                      embs2.astype(jnp.bfloat16).astype(jnp.float32),
                      leaky, act=True)
    assert out2.shape == (N2, D)
    assert jnp.allclose(out2, ref2, atol=2e-3, rtol=2e-3), \
        "mismatch vs reference (ragged N)"

    print("KERNEL_OK")
</pallas_src>

<mosaic_0001>
module attributes {stable_mosaic.version = 11 : i64} {
  func.func @_hgcn_fused_kernel(%arg0: i32, %arg1: i32, %arg2: memref<64x128xbf16, #tpu.memory_space<vmem>>, %arg3: memref<64x128xbf16, #tpu.memory_space<vmem>>, %arg4: memref<64x128xf32, #tpu.memory_space<vmem>>, %arg5: memref<128x128xf32, #tpu.memory_space<vmem>>) attributes {dimension_semantics = [#tpu.dimension_semantics<arbitrary>, #tpu.dimension_semantics<arbitrary>], iteration_bounds = array<i64: 2, 4>, scalar_prefetch = 0 : i64, scratch_operands = 1 : i64, tpu.core_type = #tpu.core_type<tc>, window_params = [{transform_indices = @transform_0, window_bounds = array<i64: 64, 128>}, {transform_indices = @transform_1, window_bounds = array<i64: 64, 128>}, {transform_indices = @transform_2, window_bounds = array<i64: 64, 128>}]} {
    %c0_i32 = arith.constant 0 : i32
    %0 = arith.cmpi eq, %arg0, %c0_i32 : i32
    %c0_i32_0 = arith.constant 0 : i32
    %1 = arith.cmpi eq, %arg1, %c0_i32_0 : i32
    %2 = arith.andi %0, %1 : i1
    %3 = arith.extui %2 : i1 to i32
    %c0_i32_1 = arith.constant 0 : i32
    %4 = arith.cmpi ne, %3, %c0_i32_1 : i32
    scf.if %4 {
      %cst = arith.constant 0.000000e+00 : f32
      %11 = vector.broadcast %cst : f32 to vector<128x128xf32>
      %c0 = arith.constant 0 : index
      %c0_5 = arith.constant 0 : index
      %12 = vector.load %arg5[%c0, %c0_5] : memref<128x128xf32, #tpu.memory_space<vmem>>, vector<128x128xf32>
      tpu.vector_store %arg5[%c0, %c0_5], %11 {strides = array<i32>} : memref<128x128xf32, #tpu.memory_space<vmem>>, vector<128x128xf32>,
    } else {
    }
    %c0_i32_2 = arith.constant 0 : i32
    %5 = arith.cmpi eq, %arg0, %c0_i32_2 : i32
    %6 = arith.extui %5 : i1 to i32
    %c0_i32_3 = arith.constant 0 : i32
    %7 = arith.cmpi ne, %6, %c0_i32_3 : i32
    scf.if %7 {
      %c0 = arith.constant 0 : index
      %c0_5 = arith.constant 0 : index
      %11 = vector.load %arg5[%c0, %c0_5] : memref<128x128xf32, #tpu.memory_space<vmem>>, vector<128x128xf32>
      %c0_6 = arith.constant 0 : index
      %c0_7 = arith.constant 0 : index
      %12 = vector.load %arg2[%c0_6, %c0_7] : memref<64x128xbf16, #tpu.memory_space<vmem>>, vector<64x128xbf16>
      %c0_8 = arith.constant 0 : index
      %c0_9 = arith.constant 0 : index
      %13 = vector.load %arg3[%c0_8, %c0_9] : memref<64x128xbf16, #tpu.memory_space<vmem>>, vector<64x128xbf16>
      %cst = arith.constant dense<0.000000e+00> : vector<128x128xf32>
      %14 = tpu.matmul %12, %13, %cst {dimension_numbers = #tpu.dot_dimension_numbers<[0], [0], [1], [1], [0, 1, 1, 1], [], []>} : vector<64x128xbf16>, vector<64x128xbf16>, vector<128x128xf32> -> vector<128x128xf32>
      %15 = arith.addf %11, %14 : vector<128x128xf32>
      %c0_10 = arith.constant 0 : index
      %c0_11 = arith.constant 0 : index
      %16 = vector.load %arg5[%c0_10, %c0_11] : memref<128x128xf32, #tpu.memory_space<vmem>>, vector<128x128xf32>
      tpu.vector_store %arg5[%c0_10, %c0_11], %15 {strides = array<i32>} : memref<128x128xf32, #tpu.memory_space<vmem>>, vector<128x128xf32>,
    } else {
    }
    %c1_i32 = arith.constant 1 : i32
    %8 = arith.cmpi eq, %arg0, %c1_i32 : i32
    %9 = arith.extui %8 : i1 to i32
    %c0_i32_4 = arith.constant 0 : i32
    %10 = arith.cmpi ne, %9, %c0_i32_4 : i32
    scf.if %10 {
      %c0 = arith.constant 0 : index
      %c0_5 = arith.constant 0 : index
      %11 = vector.load %arg5[%c0, %c0_5] : memref<128x128xf32, #tpu.memory_space<vmem>>, vector<128x128xf32>
      %12 = arith.truncf %11 : vector<128x128xf32> to vector<128x128xbf16>
      %13 = arith.extf %12 : vector<128x128xbf16> to vector<128x128xf32>
      %14 = arith.subf %11, %13 : vector<128x128xf32>
      %15 = arith.truncf %14 : vector<128x128xf32> to vector<128x128xbf16>
      %c0_6 = arith.constant 0 : index
      %c0_7 = arith.constant 0 : index
      %16 = vector.load %arg2[%c0_6, %c0_7] : memref<64x128xbf16, #tpu.memory_space<vmem>>, vector<64x128xbf16>
      %cst = arith.constant dense<0.000000e+00> : vector<64x128xf32>
      %17 = tpu.matmul %16, %12, %cst {dimension_numbers = #tpu.dot_dimension_numbers<[1], [0], [0], [1], [0, 0, 1, 1], [], []>} : vector<64x128xbf16>, vector<128x128xbf16>, vector<64x128xf32> -> vector<64x128xf32>
      %cst_8 = arith.constant dense<0.000000e+00> : vector<64x128xf32>
      %18 = tpu.matmul %16, %15, %cst_8 {dimension_numbers = #tpu.dot_dimension_numbers<[1], [0], [0], [1], [0, 0, 1, 1], [], []>} : vector<64x128xbf16>, vector<128x128xbf16>, vector<64x128xf32> -> vector<64x128xf32>
      %19 = arith.addf %17, %18 : vector<64x128xf32>
      %cst_9 = arith.constant 0.000000e+00 : f32
      %20 = vector.broadcast %cst_9 : f32 to vector<64x128xf32>
      %21 = arith.cmpf oge, %19, %20 : vector<64x128xf32>
      %cst_10 = arith.constant 5.000000e-01 : f32
      %22 = vector.broadcast %cst_10 : f32 to vector<64x128xf32>
      %23 = arith.mulf %22, %19 : vector<64x128xf32>
      %24 = arith.select %21, %19, %23 : vector<64x128xi1>, vector<64x128xf32>
      %c0_11 = arith.constant 0 : index
      %c0_12 = arith.constant 0 : index
      %25 = vector.load %arg4[%c0_11, %c0_12] : memref<64x128xf32, #tpu.memory_space<vmem>>, vector<64x128xf32>
      tpu.vector_store %arg4[%c0_11, %c0_12], %24 {strides = array<i32>} : memref<64x128xf32, #tpu.memory_space<vmem>>, vector<64x128xf32>,
    } else {
    }
    return
  }
  func.func @transform_0(%arg0: i32, %arg1: i32) -> (i32, i32) {
    %c0_i32 = arith.constant 0 : i32
    %c0_i32_0 = arith.constant 0 : i32
    return %arg1, %c0_i32 : i32, i32
  }
  func.func @transform_1(%arg0: i32, %arg1: i32) -> (i32, i32) {
    %c1_i32 = arith.constant 1 : i32
    %0 = arith.subi %c1_i32, %arg0 : i32
    %1 = arith.muli %arg1, %0 : i32
    %c0_i32 = arith.constant 0 : i32
    %c0_i32_0 = arith.constant 0 : i32
    return %1, %c0_i32 : i32, i32
  }
  func.func @transform_2(%arg0: i32, %arg1: i32) -> (i32, i32) {
    %0 = arith.muli %arg1, %arg0 : i32
    %c0_i32 = arith.constant 0 : i32
    %c0_i32_0 = arith.constant 0 : i32
    return %0, %c0_i32 : i32, i32
  }
}

</mosaic_0001>

<llo_original>
// kernel: tpu_custom_call.1
$region0: #{tpu_custom_call.1}
  #allocation0 [shape = 'u32[]', space=smem, size = 0x4, offset = 0x4, fixed_abs, tag = 'smem constant byte address 0x4 - core index']
  #allocation1 [shape = 'u32[72,128]{1,0:T(1,128)}', space=vmem, size = 0x9000, scoped, tag = 'internal scratch']
  #allocation2 [shape = 'f32[128,128]{1,0:T(8,128)}', space=vmem, size = 0x10000, scoped, tag = 'scratch operand']
  %s0 = inlined_call_operand.hbm [shape: bf16[256,128], index: 0, kind: input, shape index: {}]
  %s1 = inlined_call_operand.hbm [shape: bf16[256,128], index: 1, kind: input, shape index: {}]
  %s2 = inlined_call_operand.hbm [shape: f32[256,128], index: 2, kind: output, shape index: {}]
  %s3 = sld [smem:[#allocation0]]
  $region61: #{tpu_custom_call.1} parent=0
    _
  %s5 = ssub.s32 1, %s3
  %s6 = scalar_select 0, %s5, %s3
  $region1: #{tpu_custom_call.1} parent=0
    #allocation3 [shape = 'u8[32768]{0}', space=vmem, size = 0x8000, scoped, tag = 'input window, operand 0']
    #allocation4 [shape = 's32[2]{0}', space=sflag, size = 0x8, scoped, tag = 'scoped memory for tpu_custom_call.1']
    #allocation5 [shape = 's32[2]{0}', space=sflag, size = 0x8, scoped, tag = 'scoped memory for tpu_custom_call.1']
    #allocation6 [shape = 'u8[32768]{0}', space=vmem, size = 0x8000, scoped, tag = 'input window, operand 1']
    #allocation7 [shape = 's32[2]{0}', space=sflag, size = 0x8, scoped, tag = 'scoped memory for tpu_custom_call.1']
    #allocation8 [shape = 'u8[65536]{0}', space=vmem, size = 0x10000, scoped, tag = 'output window, operand 0']
    %7 = vsyncpa [#allocation4], 0
    %s8 = scalar_lea.sflag [#allocation4], 1
    %9 = vsyncpa %s8, 0
    %10 = vsyncpa [#allocation7], 0
    %s11 = scalar_lea.sflag [#allocation7], 1
    %12 = vsyncpa %s11, 0
    %13 = vsyncpa [#allocation5], 0
    %s14 = scalar_lea.sflag [#allocation5], 1
    %15 = vsyncpa %s14, 0
    loop: start=0, step=1, limit=10
    $region2: #{tpu_custom_call.1} parent=1 // loop_pre_header
      _
    $region3: #{tpu_custom_call.1} parent=1 // loop_header
      %s17 = sphi 0, %s21
      %p18 = scmp.ge.s32.totalorder %s17, 10
      %s24 = sphi 0, %s36
      %s25 = sphi 0, %s32
      %s26 = sphi 0, %s24
      %s27 = sphi 0, %s25
      %s28 = sphi 0, %s26
      %s29 = sphi 0, %s27
      %s39 = sphi 0, %s41
      %s42 = sphi 0, %s39
      %s43 = sphi 0, %s42
      %s59 = sphi 0, %s43
      %s69 = sphi 0, %s71
      %s72 = sphi 0, %s69
      %s73 = sphi 0, %s72
      %s89 = sphi 0, %s73
      %s97 = sphi 0, %s99
      %s100 = sphi 0, %s97
      %s101 = sphi 0, %s100
      %s117 = sphi 0, %s101
    $region4: #{tpu_custom_call.1} parent=1 // loop_header_branch
      %20 = sbr.rel (%p18) target = $region8
    $region5: #{tpu_custom_call.1} parent=1 // loop_body
      %s22 = ssub.s32 %s17, 1
      %s23 = ssub.s32 %s17, 2
      %s30 = sadd.s32 1, %s25
      %p31 = scmp.ge.s32.totalorder %s30, 4
      %s32 = scalar_select %p31, 0, %s30
      %s33 = sadd.s32 1, %s24
      %s34 = scalar_select %p31, %s33, %s24
      %p35 = scmp.ge.s32.totalorder %s34, 2
      %s36 = scalar_select %p35, 0, %s34
      %s37 = ssub.s32 %s25, %s32
      %p38 = scmp.eq.s32.totalorder %s37, 0
      %s40 = sadd.s32 %s39, 1
      %s41 = scalar_select %p38, %s39, %s40
      %p44 = pneg %p38
      %p45 = scmp.eq.s32.totalorder %s17, 7
      %p46 = por %p44, %p45
      %p47 = scmp.ne.s32.totalorder %s39, %s42
      %p48 = scmp.eq.s32.totalorder %s17, 0
      %p49 = por %p47, %p48
      %p50 = scmp.ne.s32.totalorder %s39, %s42
      %p51 = scmp.eq.s32.totalorder %s22, 7
      %p52 = por %p50, %p51
      %p53 = scmp.ne.s32.totalorder %s42, %s43
      %p54 = scmp.eq.s32.totalorder %s22, 0
      %p55 = por %p53, %p54
      %p56 = scmp.ne.s32.totalorder %s42, %s43
      %p57 = scmp.eq.s32.totalorder %s23, 7
      %p58 = por %p56, %p57
      %p60 = scmp.ne.s32.totalorder %s43, %s59
      %p61 = scmp.eq.s32.totalorder %s23, 0
      %p62 = por %p60, %p61
      %s63 = ssub.s32 1, %s24
      %s64 = smul.u32 %s25, %s63
      %s65 = ssub.s32 1, %s36
      %s66 = smul.u32 %s32, %s65
      %s67 = ssub.s32 %s64, %s66
      %p68 = scmp.eq.s32.totalorder %s67, 0
      %s70 = sadd.s32 %s69, 1
      %s71 = scalar_select %p68, %s69, %s70
      %p74 = pneg %p68
      %p75 = scmp.eq.s32.totalorder %s17, 7
      %p76 = por %p74, %p75
      %p77 = scmp.ne.s32.totalorder %s69, %s72
      %p78 = scmp.eq.s32.totalorder %s17, 0
      %p79 = por %p77, %p78
      %p80 = scmp.ne.s32.totalorder %s69, %s72
      %p81 = scmp.eq.s32.totalorder %s22, 7
      %p82 = por %p80, %p81
      %p83 = scmp.ne.s32.totalorder %s72, %s73
      %p84 = scmp.eq.s32.totalorder %s22, 0
      %p85 = por %p83, %p84
      %p86 = scmp.ne.s32.totalorder %s72, %s73
      %p87 = scmp.eq.s32.totalorder %s23, 7
      %p88 = por %p86, %p87
      %p90 = scmp.ne.s32.totalorder %s73, %s89
      %p91 = scmp.eq.s32.totalorder %s23, 0
      %p92 = por %p90, %p91
      %s93 = smul.u32 %s25, %s24
      %s94 = smul.u32 %s32, %s36
      %s95 = ssub.s32 %s93, %s94
      %p96 = scmp.eq.s32.totalorder %s95, 0
      %s98 = sadd.s32 %s97, 1
      %s99 = scalar_select %p96, %s97, %s98
      %p102 = pneg %p96
      %p103 = scmp.eq.s32.totalorder %s17, 7
      %p104 = por %p102, %p103
      %p105 = scmp.ne.s32.totalorder %s97, %s100
      %p106 = scmp.eq.s32.totalorder %s17, 0
      %p107 = por %p105, %p106
      %p108 = scmp.ne.s32.totalorder %s97, %s100
      %p109 = scmp.eq.s32.totalorder %s22, 7
      %p110 = por %p108, %p109
      %p111 = scmp.ne.s32.totalorder %s100, %s101
      %p112 = scmp.eq.s32.totalorder %s22, 0
      %p113 = por %p111, %p112
      %p114 = scmp.ne.s32.totalorder %s100, %s101
      %p115 = scmp.eq.s32.totalorder %s23, 7
      %p116 = por %p114, %p115
      %p118 = scmp.ne.s32.totalorder %s101, %s117
      %p119 = scmp.eq.s32.totalorder %s23, 0
      %p120 = por %p118, %p119
      %p121 = scmp.le.s32.totalorder 1, %s17
      %p122 = scmp.lt.s32.totalorder %s17, 9
      %p123 = pnand %p121, %p122
      %p124 = pneg %p123
      // Predicated region
      $region9: #{tpu_custom_call.1} parent=5 // pred_check
        _
      $region10: #{tpu_custom_call.1} parent=5 // pred_check_branch
        %126 = sbr.rel (%p123) target = $region12
      $region11: #{tpu_custom_call.1} parent=5 // pred_region
        %s127 = ssub.s32 %s17, 1
      $region12: #{tpu_custom_call.1} parent=5 // pred_fallthru
        _
      %p128 = scmp.lt.s32.totalorder %s17, 8
      // Predicated region
      $region13: #{tpu_custom_call.1} parent=5 // pred_check
        %p129 = pneg %p128
      $region14: #{tpu_custom_call.1} parent=5 // pred_check_branch
        %131 = sbr.rel (%p129) target = $region16
      $region15: #{tpu_custom_call.1} parent=5 // pred_region
        // Predicated region
        $region17: #{tpu_custom_call.1} parent=15 // pred_check
          %p132 = pneg %p49
        $region18: #{tpu_custom_call.1} parent=15 // pred_check_branch
          %134 = sbr.rel (%p132) target = $region20
        $region19: #{tpu_custom_call.1} parent=15 // pred_region
          %s135 = sand.u32 %s39, 1
          %s136 = scalar_lea.sflag [#allocation4], %s135
          %s137 = sand.u32 %s39, 1
          %s138 = smul.addr %s137, 32
          %s139 = scalar_lea.vmem [#allocation3], %s138
          %s140 = smul.u32 8, %s25
          %142 = vsyncadd %s136, 0
          %s143 = smul.addr %s140, 4
          %s144 = scalar_lea.hbm %s0, %s143
          %s145 = sshll.u32 %s144, 4
          %s146 = int_to_ptr.hbm [resolvable:$true] %s145
          %s147 = sshll.u32 %s139, 4
          %s148 = int_to_ptr.vmem [resolvable:$true] %s147
          %153 = dma.hbm_to_vmem [thread:$0]  %s146, 512, %s148, %s136, 64, 64, 4
        $region20: #{tpu_custom_call.1} parent=15 // pred_fallthru
          _
        // Predicated region
        $region21: #{tpu_custom_call.1} parent=15 // pred_check
          %p154 = pneg %p79
        $region22: #{tpu_custom_call.1} parent=15 // pred_check_branch
          %156 = sbr.rel (%p154) target = $region24
        $region23: #{tpu_custom_call.1} parent=15 // pred_region
          %s157 = sand.u32 %s69, 1
          %s158 = scalar_lea.sflag [#allocation7], %s157
          %s159 = sand.u32 %s69, 1
          %s160 = smul.addr %s159, 32
          %s161 = scalar_lea.vmem [#allocation6], %s160
          %s162 = ssub.s32 1, %s24
          %s163 = smul.u32 %s25, %s162
          %s164 = smul.u32 8, %s163
          %166 = vsyncadd %s158, 0
          %s167 = smul.addr %s164, 4
          %s168 = scalar_lea.hbm %s1, %s167
          %s169 = sshll.u32 %s168, 4
          %s170 = int_to_ptr.hbm [resolvable:$true] %s169
          %s171 = sshll.u32 %s161, 4
          %s172 = int_to_ptr.vmem [resolvable:$true] %s171
          %177 = dma.hbm_to_vmem [thread:$0]  %s170, 512, %s172, %s158, 64, 64, 4
        $region24: #{tpu_custom_call.1} parent=15 // pred_fallthru
          _
      $region16: #{tpu_custom_call.1} parent=5 // pred_fallthru
        _
      %p178 = scmp.le.s32.totalorder 1, %s17
      %p179 = scmp.lt.s32.totalorder %s17, 9
      %p180 = pnand %p178, %p179
      %p181 = pneg %p180
      // Predicated region
      $region25: #{tpu_custom_call.1} parent=5 // pred_check
        _
      $region26: #{tpu_custom_call.1} parent=5 // pred_check_branch
        %183 = sbr.rel (%p180) target = $region28
      $region27: #{tpu_custom_call.1} parent=5 // pred_region
        %s184 = ssub.s32 %s17, 1
        %s185 = sand.u32 %s42, 1
        %s186 = scalar_lea.sflag [#allocation4], %s185
        %s187 = sand.u32 %s42, 1
        %s188 = smul.addr %s187, 32
        %s189 = scalar_lea.vmem [#allocation3], %s188
        // Predicated region
        $region29: #{tpu_custom_call.1} parent=27 // pred_check
          %p190 = pneg %p55
        $region30: #{tpu_custom_call.1} parent=27 // pred_check_branch
          %192 = sbr.rel (%p190) target = $region32
        $region31: #{tpu_custom_call.1} parent=27 // pred_region
          %194 = dma.done %s186, 512
        $region32: #{tpu_custom_call.1} parent=27 // pred_fallthru
          _
        %s195 = sand.u32 %s72, 1
        %s196 = scalar_lea.sflag [#allocation7], %s195
        %s197 = sand.u32 %s72, 1
        %s198 = smul.addr %s197, 32
        %s199 = scalar_lea.vmem [#allocation6], %s198
        // Predicated region
        $region33: #{tpu_custom_call.1} parent=27 // pred_check
          %p200 = pneg %p85
        $region34: #{tpu_custom_call.1} parent=27 // pred_check_branch
          %202 = sbr.rel (%p200) target = $region36
        $region35: #{tpu_custom_call.1} parent=27 // pred_region
          %204 = dma.done %s196, 512
        $region36: #{tpu_custom_call.1} parent=27 // pred_fallthru
          _
        %s205 = sand.u32 %s42, 1
        %s206 = scalar_lea.sflag [#allocation4], %s205
        %s207 = sand.u32 %s42, 1
        %s208 = smul.addr %s207, 32
        %s209 = scalar_lea.vmem [#allocation3], %s208
        %p210 = pneg %p55
        %p211 = pneg %p52
        %s212 = sand.u32 %s72, 1
        %s213 = scalar_lea.sflag [#allocation7], %s212
        %s214 = sand.u32 %s72, 1
        %s215 = smul.addr %s214, 32
        %s216 = scalar_lea.vmem [#allocation6], %s215
        %p217 = pneg %p85
        %p218 = pneg %p82
        %p219 = pneg %p113
        %p220 = pneg %p110
        %s221 = sand.u32 %s100, 1
        %s222 = scalar_lea.sflag [#allocation5], %s221
        %s223 = sand.u32 %s100, 1
        %s224 = smul.addr %s223, 64
        %s225 = scalar_lea.vmem [#allocation8], %s224
        %s226 = smul.u32 8, %s27
        %s227 = ssub.s32 1, %s26
        %s228 = smul.u32 %s27, %s227
        %s229 = smul.u32 8, %s228
        %s230 = smul.u32 %s27, %s26
        %s231 = smul.u32 8, %s230
        %p233 = scmp.eq.s32.totalorder %s26, 0
        %p234 = scmp.eq.s32.totalorder %s27, 0
        %p235 = pnand %p233, %p234
        %p236 = pneg %p235
        // Predicated region
        $region37: #{tpu_custom_call.1} parent=27 // pred_check
          _
        $region38: #{tpu_custom_call.1} parent=27 // pred_check_branch
          %238 = sbr.rel (%p235) target = $region40
        $region39: #{tpu_custom_call.1} parent=27 // pred_region
          %239 = vst [vmem:[#allocation2] sm:$0xff] 0.0
          %240 = vst [vmem:[#allocation2 + $0x8] sm:$0xff] 0.0
          %241 = vst [vmem:[#allocation2 + $0x10] sm:$0xff] 0.0
          %242 = vst [vmem:[#allocation2 + $0x18] sm:$0xff] 0.0
          %243 = vst [vmem:[#allocation2 + $0x20] sm:$0xff] 0.0
          %244 = vst [vmem:[#allocation2 + $0x28] sm:$0xff] 0.0
          %245 = vst [vmem:[#allocation2 + $0x30] sm:$0xff] 0.0
          %246 = vst [vmem:[#allocation2 + $0x38] sm:$0xff] 0.0
          %247 = vst [vmem:[#allocation2 + $0x40] sm:$0xff] 0.0
          %248 = vst [vmem:[#allocation2 + $0x48] sm:$0xff] 0.0
          %249 = vst [vmem:[#allocation2 + $0x50] sm:$0xff] 0.0
          %250 = vst [vmem:[#allocation2 + $0x58] sm:$0xff] 0.0
          %251 = vst [vmem:[#allocation2 + $0x60] sm:$0xff] 0.0
          %252 = vst [vmem:[#allocation2 + $0x68] sm:$0xff] 0.0
          %253 = vst [vmem:[#allocation2 + $0x70] sm:$0xff] 0.0
          %254 = vst [vmem:[#allocation2 + $0x78] sm:$0xff] 0.0
        $region40: #{tpu_custom_call.1} parent=27 // pred_fallthru
          _
        // Predicated region
        $region41: #{tpu_custom_call.1} parent=27 // pred_check
          %p255 = pneg %p233
        $region42: #{tpu_custom_call.1} parent=27 // pred_check_branch
          %257 = sbr.rel (%p255) target = $region44
        $region43: #{tpu_custom_call.1} parent=27 // pred_region
          %v258 = vld [vmem:[#allocation2] sm:$0xff]
          %v259 = vld [vmem:[#allocation2 + $0x8] sm:$0xff]
          %v260 = vld [vmem:[#allocation2 + $0x10] sm:$0xff]
          %v261 = vld [vmem:[#allocation2 + $0x18] sm:$0xff]
          %v262 = vld [vmem:[#allocation2 + $0x20] sm:$0xff]
          %v263 = vld [vmem:[#allocation2 + $0x28] sm:$0xff]
          %v264 = vld [vmem:[#allocation2 + $0x30] sm:$0xff]
          %v265 = vld [vmem:[#allocation2 + $0x38] sm:$0xff]
          %v266 = vld [vmem:[#allocation2 + $0x40] sm:$0xff]
          %v267 = vld [vmem:[#allocation2 + $0x48] sm:$0xff]
          %v268 = vld [vmem:[#allocation2 + $0x50] sm:$0xff]
          %v269 = vld [vmem:[#allocation2 + $0x58] sm:$0xff]
          %v270 = vld [vmem:[#allocation2 + $0x60] sm:$0xff]
          %v271 = vld [vmem:[#allocation2 + $0x68] sm:$0xff]
          %v272 = vld [vmem:[#allocation2 + $0x70] sm:$0xff]
          %v273 = vld [vmem:[#allocation2 + $0x78] sm:$0xff]
          %v274 = vld [vmem:[%s189] sm:$0xf]
          %v275 = vld [vmem:[%s189 + $0x4] sm:$0xf]
          %v276 = vld [vmem:[%s189 + $0x8] sm:$0xf]
          %v277 = vld [vmem:[%s189 + $0xc] sm:$0xf]
          %v278 = vld [vmem:[%s189 + $0x10] sm:$0xf]
          %v279 = vld [vmem:[%s189 + $0x14] sm:$0xf]
          %v280 = vld [vmem:[%s189 + $0x18] sm:$0xf]
          %v281 = vld [vmem:[%s189 + $0x1c] sm:$0xf]
          %v282 = vld [vmem:[%s199] sm:$0xf]
          %v283 = vld [vmem:[%s199 + $0x4] sm:$0xf]
          %v284 = vld [vmem:[%s199 + $0x8] sm:$0xf]
          %v285 = vld [vmem:[%s199 + $0xc] sm:$0xf]
          %v286 = vld [vmem:[%s199 + $0x10] sm:$0xf]
          %v287 = vld [vmem:[%s199 + $0x14] sm:$0xf]
          %v288 = vld [vmem:[%s199 + $0x18] sm:$0xf]
          %v289 = vld [vmem:[%s199 + $0x1c] sm:$0xf]
          %v298 = vunpack.c.l.b16 %v274
          %v299 = vunpack.c.l.b16 %v275
          %v300 = vunpack.c.l.b16 %v276
          %v301 = vunpack.c.l.b16 %v277
          %v302 = vunpack.c.l.b16 %v278
          %v303 = vunpack.c.l.b16 %v279
          %v304 = vunpack.c.l.b16 %v280
          %v305 = vunpack.c.l.b16 %v281
          %v306 = vpack.c.b16 %v299, %v298
          %v307 = vpack.c.b16 %v301, %v300
          %v308 = vpack.c.b16 %v303, %v302
          %v309 = vpack.c.b16 %v305, %v304
          %314 = vxpose.xlu0.c.b16.start [1/8] %v306, 128
          %315 = vxpose.xlu0.c.b16.cont [2/8] %v307, 128
          %316 = vxpose.xlu0.c.b16.cont [3/8] %v308, 128
          %317 = vxpose.xlu0.c.b16.cont [4/8] %v309, 128
          %318 = vxpose.xlu0.c.b16.cont [5/8] 0, 128
          %319 = vxpose.xlu0.c.b16.cont [6/8] 0, 128
          %320 = vxpose.xlu0.c.b16.cont [7/8] 0, 128
          %321 = vxpose.xlu0.c.b16.end [8/8] 0, 128
          %v322 = vpop.trf.xlu0
          %v323 = vpop.trf.xlu0
          %v324 = vpop.trf.xlu0
          %v325 = vpop.trf.xlu0
          %v326 = vpop.trf.xlu0
          %v327 = vpop.trf.xlu0
          %v328 = vpop.trf.xlu0
          %v329 = vpop.trf.xlu0
          %v338 = vunpack.c.l.b16 %v282
          %v339 = vunpack.c.l.b16 %v283
          %v340 = vunpack.c.l.b16 %v284
          %v341 = vunpack.c.l.b16 %v285
          %v342 = vunpack.c.l.b16 %v286
          %v343 = vunpack.c.l.b16 %v287
          %v344 = vunpack.c.l.b16 %v288
          %v345 = vunpack.c.l.b16 %v289
          %v346 = vpack.c.b16 %v339, %v338
          %v347 = vpack.c.b16 %v341, %v340
          %v348 = vpack.c.b16 %v343, %v342
          %v349 = vpack.c.b16 %v345, %v344
          %vm354 = vcmask 523264
          %v356 = vsel %vm354, %v322, 0
          %v359 = vsel %vm354, %v323, 0
          %v362 = vsel %vm354, %v324, 0
          %v365 = vsel %vm354, %v325, 0
          %v368 = vsel %vm354, %v326, 0
          %v371 = vsel %vm354, %v327, 0
          %v374 = vsel %vm354, %v328, 0
          %v377 = vsel %vm354, %v329, 0
          %379 = vmatpush.bf16.msra.mxu0 0
          %380 = vmatpush.bf16.msra.mxu0 0
          %381 = vmatpush.bf16.msra.mxu0 0
          %382 = vmatpush.bf16.msra.mxu0 0
          %383 = vmatpush.bf16.msra.mxu0 %v349
          %384 = vmatpush.bf16.msra.mxu0 %v348
          %385 = vmatpush.bf16.msra.mxu0 %v347
          %386 = vmatpush.bf16.msra.mxu0 %v346
          %387 = vmatmul.bf16.gmra.mxu0 %v356
          %v388 = vpop.f32.mrf.mxu0
          %v389 = vadd.f32 0.0, %v388
          %v390 = vpop.f32.mrf.mxu0
          %v391 = vadd.f32 0.0, %v390
          %392 = vmatmul.bf16.gmra.mxu0 %v359
          %v393 = vpop.f32.mrf.mxu0
          %v394 = vadd.f32 0.0, %v393
          %v395 = vpop.f32.mrf.mxu0
          %v396 = vadd.f32 0.0, %v395
          %397 = vmatmul.bf16.gmra.mxu0 %v362
          %v398 = vpop.f32.mrf.mxu0
          %v399 = vadd.f32 0.0, %v398
          %v400 = vpop.f32.mrf.mxu0
          %v401 = vadd.f32 0.0, %v400
          %402 = vmatmul.bf16.gmra.mxu0 %v365
          %v403 = vpop.f32.mrf.mxu0
          %v404 = vadd.f32 0.0, %v403
          %v405 = vpop.f32.mrf.mxu0
          %v406 = vadd.f32 0.0, %v405
          %407 = vmatmul.bf16.gmra.mxu0 %v368
          %v408 = vpop.f32.mrf.mxu0
          %v409 = vadd.f32 0.0, %v408
          %v410 = vpop.f32.mrf.mxu0
          %v411 = vadd.f32 0.0, %v410
          %412 = vmatmul.bf16.gmra.mxu0 %v371
          %v413 = vpop.f32.mrf.mxu0
          %v414 = vadd.f32 0.0, %v413
          %v415 = vpop.f32.mrf.mxu0
          %v416 = vadd.f32 0.0, %v415
          %417 = vmatmul.bf16.gmra.mxu0 %v374
          %v418 = vpop.f32.mrf.mxu0
          %v419 = vadd.f32 0.0, %v418
          %v420 = vpop.f32.mrf.mxu0
          %v421 = vadd.f32 0.0, %v420
          %422 = vmatmul.bf16.gmra.mxu0 %v377
          %v423 = vpop.f32.mrf.mxu0
          %v424 = vadd.f32 0.0, %v423
          %v425 = vpop.f32.mrf.mxu0
          %v426 = vadd.f32 0.0, %v425
          %427 = vdwg.mxu0
          %v428 = vadd.f32 %v258, %v389
          %v429 = vadd.f32 %v259, %v391
          %v430 = vadd.f32 %v260, %v394
          %v431 = vadd.f32 %v261, %v396
          %v432 = vadd.f32 %v262, %v399
          %v433 = vadd.f32 %v263, %v401
          %v434 = vadd.f32 %v264, %v404
          %v435 = vadd.f32 %v265, %v406
          %v436 = vadd.f32 %v266, %v409
          %v437 = vadd.f32 %v267, %v411
          %v438 = vadd.f32 %v268, %v414
          %v439 = vadd.f32 %v269, %v416
          %v440 = vadd.f32 %v270, %v419
          %v441 = vadd.f32 %v271, %v421
          %v442 = vadd.f32 %v272, %v424
          %v443 = vadd.f32 %v273, %v426
          %444 = vst [vmem:[#allocation2] sm:$0xff] %v428
          %445 = vst [vmem:[#allocation2 + $0x8] sm:$0xff] %v429
          %446 = vst [vmem:[#allocation2 + $0x10] sm:$0xff] %v430
          %447 = vst [vmem:[#allocation2 + $0x18] sm:$0xff] %v431
          %448 = vst [vmem:[#allocation2 + $0x20] sm:$0xff] %v432
          %449 = vst [vmem:[#allocation2 + $0x28] sm:$0xff] %v433
          %450 = vst [vmem:[#allocation2 + $0x30] sm:$0xff] %v434
          %451 = vst [vmem:[#allocation2 + $0x38] sm:$0xff] %v435
          %452 = vst [vmem:[#allocation2 + $0x40] sm:$0xff] %v436
          %453 = vst [vmem:[#allocation2 + $0x48] sm:$0xff] %v437
          %454 = vst [vmem:[#allocation2 + $0x50] sm:$0xff] %v438
          %455 = vst [vmem:[#allocation2 + $0x58] sm:$0xff] %v439
          %456 = vst [vmem:[#allocation2 + $0x60] sm:$0xff] %v440
          %457 = vst [vmem:[#allocation2 + $0x68] sm:$0xff] %v441
          %458 = vst [vmem:[#allocation2 + $0x70] sm:$0xff] %v442
          %459 = vst [vmem:[#allocation2 + $0x78] sm:$0xff] %v443
        $region44: #{tpu_custom_call.1} parent=27 // pred_fallthru
          _
        %p460 = scmp.eq.s32.totalorder %s26, 1
        // Predicated region
        $region45: #{tpu_custom_call.1} parent=27 // pred_check
          %p461 = pneg %p460
        $region46: #{tpu_custom_call.1} parent=27 // pred_check_branch
          %463 = sbr.rel (%p461) target = $region48
        $region47: #{tpu_custom_call.1} parent=27 // pred_region
          %v464 = vld [vmem:[#allocation2] sm:$0xff]
          %v465 = vld [vmem:[#allocation2 + $0x8] sm:$0xff]
          %v466 = vld [vmem:[#allocation2 + $0x10] sm:$0xff]
          %v467 = vld [vmem:[#allocation2 + $0x18] sm:$0xff]
          %v468 = vld [vmem:[#allocation2 + $0x20] sm:$0xff]
          %v469 = vld [vmem:[#allocation2 + $0x28] sm:$0xff]
          %v470 = vld [vmem:[#allocation2 + $0x30] sm:$0xff]
          %v471 = vld [vmem:[#allocation2 + $0x38] sm:$0xff]
          %v472 = vld [vmem:[#allocation2 + $0x40] sm:$0xff]
          %v473 = vld [vmem:[#allocation2 + $0x48] sm:$0xff]
          %v474 = vld [vmem:[#allocation2 + $0x50] sm:$0xff]
          %v475 = vld [vmem:[#allocation2 + $0x58] sm:$0xff]
          %v476 = vld [vmem:[#allocation2 + $0x60] sm:$0xff]
          %v477 = vld [vmem:[#allocation2 + $0x68] sm:$0xff]
          %v478 = vld [vmem:[#allocation2 + $0x70] sm:$0xff]
          %v479 = vld [vmem:[#allocation2 + $0x78] sm:$0xff]
          %v480 = vpack.c.bf16 %v464, %v464
          %v481 = vpack.c.bf16 %v465, %v465
          %v482 = vpack.c.bf16 %v466, %v466
          %v483 = vpack.c.bf16 %v467, %v467
          %v484 = vpack.c.bf16 %v468, %v468
          %v485 = vpack.c.bf16 %v469, %v469
          %v486 = vpack.c.bf16 %v470, %v470
          %v487 = vpack.c.bf16 %v471, %v471
          %v488 = vpack.c.bf16 %v472, %v472
          %v489 = vpack.c.bf16 %v473, %v473
          %v490 = vpack.c.bf16 %v474, %v474
          %v491 = vpack.c.bf16 %v475, %v475
          %v492 = vpack.c.bf16 %v476, %v476
          %v493 = vpack.c.bf16 %v477, %v477
          %v494 = vpack.c.bf16 %v478, %v478
          %v495 = vpack.c.bf16 %v479, %v479
          %v496 = vunpack.c.l.bf16 %v480
          %v497 = vunpack.c.l.bf16 %v481
          %v498 = vunpack.c.l.bf16 %v482
          %v499 = vunpack.c.l.bf16 %v483
          %v500 = vunpack.c.l.bf16 %v484
          %v501 = vunpack.c.l.bf16 %v485
          %v502 = vunpack.c.l.bf16 %v486
          %v503 = vunpack.c.l.bf16 %v487
          %v504 = vunpack.c.l.bf16 %v488
          %v505 = vunpack.c.l.bf16 %v489
          %v506 = vunpack.c.l.bf16 %v490
          %v507 = vunpack.c.l.bf16 %v491
          %v508 = vunpack.c.l.bf16 %v492
          %v509 = vunpack.c.l.bf16 %v493
          %v510 = vunpack.c.l.bf16 %v494
          %v511 = vunpack.c.l.bf16 %v495
          %v512 = vsub.f32 %v464, %v496
          %v513 = vsub.f32 %v465, %v497
          %v514 = vsub.f32 %v466, %v498
          %v515 = vsub.f32 %v467, %v499
          %v516 = vsub.f32 %v468, %v500
          %v517 = vsub.f32 %v469, %v501
          %v518 = vsub.f32 %v470, %v502
          %v519 = vsub.f32 %v471, %v503
          %v520 = vsub.f32 %v472, %v504
          %v521 = vsub.f32 %v473, %v505
          %v522 = vsub.f32 %v474, %v506
          %v523 = vsub.f32 %v475, %v507
          %v524 = vsub.f32 %v476, %v508
          %v525 = vsub.f32 %v477, %v509
          %v526 = vsub.f32 %v478, %v510
          %v527 = vsub.f32 %v479, %v511
          %v528 = vpack.c.bf16 %v513, %v512
          %v529 = vpack.c.bf16 %v515, %v514
          %v530 = vpack.c.bf16 %v517, %v516
          %v531 = vpack.c.bf16 %v519, %v518
          %v532 = vpack.c.bf16 %v521, %v520
          %v533 = vpack.c.bf16 %v523, %v522
          %v534 = vpack.c.bf16 %v525, %v524
          %v535 = vpack.c.bf16 %v527, %v526
          %v536 = vld [vmem:[%s189] sm:$0xf]
          %v537 = vld [vmem:[%s189 + $0x4] sm:$0xf]
          %v538 = vld [vmem:[%s189 + $0x8] sm:$0xf]
          %v539 = vld [vmem:[%s189 + $0xc] sm:$0xf]
          %v540 = vld [vmem:[%s189 + $0x10] sm:$0xf]
          %v541 = vld [vmem:[%s189 + $0x14] sm:$0xf]
          %v542 = vld [vmem:[%s189 + $0x18] sm:$0xf]
          %v543 = vld [vmem:[%s189 + $0x1c] sm:$0xf]
          %v552 = vunpack.c.l.b16 %v536
          %v553 = vunpack.c.l.b16 %v537
          %v554 = vunpack.c.l.b16 %v538
          %v555 = vunpack.c.l.b16 %v539
          %v556 = vunpack.c.l.b16 %v540
          %v557 = vunpack.c.l.b16 %v541
          %v558 = vunpack.c.l.b16 %v542
          %v559 = vunpack.c.l.b16 %v543
          %v560 = vpack.c.b16 %v553, %v552
          %v561 = vpack.c.b16 %v555, %v554
          %v562 = vpack.c.b16 %v557, %v556
          %v563 = vpack.c.b16 %v559, %v558
          %568 = vmatpush.bf16.msra.mxu0 %v535
          %569 = vmatpush.bf16.msra.mxu0 %v534
          %570 = vmatpush.bf16.msra.mxu0 %v533
          %571 = vmatpush.bf16.msra.mxu0 %v532
          %572 = vmatpush.bf16.msra.mxu0 %v531
          %573 = vmatpush.bf16.msra.mxu0 %v530
          %574 = vmatpush.bf16.msra.mxu0 %v529
          %575 = vmatpush.bf16.msra.mxu0 %v528
          %576 = vmatmul.bf16.gmra.mxu0 %v560
          %v577 = vpop.f32.mrf.mxu0
          %v578 = vadd.f32 0.0, %v577
          %v579 = vpop.f32.mrf.mxu0
          %v580 = vadd.f32 0.0, %v579
          %581 = vmatmul.bf16.gmra.mxu0 %v561
          %v582 = vpop.f32.mrf.mxu0
          %v583 = vadd.f32 0.0, %v582
          %v584 = vpop.f32.mrf.mxu0
          %v585 = vadd.f32 0.0, %v584
          %586 = vmatmul.bf16.gmra.mxu0 %v562
          %v587 = vpop.f32.mrf.mxu0
          %v588 = vadd.f32 0.0, %v587
          %v589 = vpop.f32.mrf.mxu0
          %v590 = vadd.f32 0.0, %v589
          %591 = vmatmul.bf16.gmra.mxu0 %v563
          %v592 = vpop.f32.mrf.mxu0
          %v593 = vadd.f32 0.0, %v592
          %v594 = vpop.f32.mrf.mxu0
          %v595 = vadd.f32 0.0, %v594
          %596 = vdwg.mxu0
          %v613 = vunpack.c.l.b16 %v480
          %v614 = vunpack.c.l.b16 %v481
          %v615 = vunpack.c.l.b16 %v482
          %v616 = vunpack.c.l.b16 %v483
          %v617 = vunpack.c.l.b16 %v484
          %v618 = vunpack.c.l.b16 %v485
          %v619 = vunpack.c.l.b16 %v486
          %v620 = vunpack.c.l.b16 %v487
          %v621 = vunpack.c.l.b16 %v488
          %v622 = vunpack.c.l.b16 %v489
          %v623 = vunpack.c.l.b16 %v490
          %v624 = vunpack.c.l.b16 %v491
          %v625 = vunpack.c.l.b16 %v492
          %v626 = vunpack.c.l.b16 %v493
          %v627 = vunpack.c.l.b16 %v494
          %v628 = vunpack.c.l.b16 %v495
          %v629 = vpack.c.b16 %v614, %v613
          %v630 = vpack.c.b16 %v616, %v615
          %v631 = vpack.c.b16 %v618, %v617
          %v632 = vpack.c.b16 %v620, %v619
          %v633 = vpack.c.b16 %v622, %v621
          %v634 = vpack.c.b16 %v624, %v623
          %v635 = vpack.c.b16 %v626, %v625
          %v636 = vpack.c.b16 %v628, %v627
          %645 = vmatpush.bf16.msra.mxu0 %v636
          %646 = vmatpush.bf16.msra.mxu0 %v635
          %647 = vmatpush.bf16.msra.mxu0 %v634
          %648 = vmatpush.bf16.msra.mxu0 %v633
          %649 = vmatpush.bf16.msra.mxu0 %v632
          %650 = vmatpush.bf16.msra.mxu0 %v631
          %651 = vmatpush.bf16.msra.mxu0 %v630
          %652 = vmatpush.bf16.msra.mxu0 %v629
          %653 = vmatmul.bf16.gmra.mxu0 %v560
          %v654 = vpop.f32.mrf.mxu0
          %v655 = vadd.f32 %v578, %v654
          %v656 = vpop.f32.mrf.mxu0
          %v657 = vadd.f32 %v580, %v656
          %658 = vmatmul.bf16.gmra.mxu0 %v561
          %v659 = vpop.f32.mrf.mxu0
          %v660 = vadd.f32 %v583, %v659
          %v661 = vpop.f32.mrf.mxu0
          %v662 = vadd.f32 %v585, %v661
          %663 = vmatmul.bf16.gmra.mxu0 %v562
          %v664 = vpop.f32.mrf.mxu0
          %v665 = vadd.f32 %v588, %v664
          %v666 = vpop.f32.mrf.mxu0
          %v667 = vadd.f32 %v590, %v666
          %668 = vmatmul.bf16.gmra.mxu0 %v563
          %v669 = vpop.f32.mrf.mxu0
          %v670 = vadd.f32 %v593, %v669
          %v671 = vpop.f32.mrf.mxu0
          %v672 = vadd.f32 %v595, %v671
          %673 = vdwg.mxu0
          %vm674 = vcmp.ge.f32.partialorder %v655, 0.0
          %vm675 = vcmp.ge.f32.partialorder %v657, 0.0
          %vm676 = vcmp.ge.f32.partialorder %v660, 0.0
          %vm677 = vcmp.ge.f32.partialorder %v662, 0.0
          %vm678 = vcmp.ge.f32.partialorder %v665, 0.0
          %vm679 = vcmp.ge.f32.partialorder %v667, 0.0
          %vm680 = vcmp.ge.f32.partialorder %v670, 0.0
          %vm681 = vcmp.ge.f32.partialorder %v672, 0.0
          %v682 = vmul.f32 %v655, 0.5
          %v683 = vmul.f32 %v657, 0.5
          %v684 = vmul.f32 %v660, 0.5
          %v685 = vmul.f32 %v662, 0.5
          %v686 = vmul.f32 %v665, 0.5
          %v687 = vmul.f32 %v667, 0.5
          %v688 = vmul.f32 %v670, 0.5
          %v689 = vmul.f32 %v672, 0.5
          %v690 = vsel %vm674, %v655, %v682
          %v691 = vsel %vm675, %v657, %v683
          %v692 = vsel %vm676, %v660, %v684
          %v693 = vsel %vm677, %v662, %v685
          %v694 = vsel %vm678, %v665, %v686
          %v695 = vsel %vm679, %v667, %v687
          %v696 = vsel %vm680, %v670, %v688
          %v697 = vsel %vm681, %v672, %v689
          %698 = vst [vmem:[%s225] sm:$0xff] %v690
          %699 = vst [vmem:[%s225 + $0x8] sm:$0xff] %v691
          %700 = vst [vmem:[%s225 + $0x10] sm:$0xff] %v692
          %701 = vst [vmem:[%s225 + $0x18] sm:$0xff] %v693
          %702 = vst [vmem:[%s225 + $0x20] sm:$0xff] %v694
          %703 = vst [vmem:[%s225 + $0x28] sm:$0xff] %v695
          %704 = vst [vmem:[%s225 + $0x30] sm:$0xff] %v696
          %705 = vst [vmem:[%s225 + $0x38] sm:$0xff] %v697
        $region48: #{tpu_custom_call.1} parent=27 // pred_fallthru
          _
        %s706 = sand.u32 %s100, 1
        %s707 = scalar_lea.sflag [#allocation5], %s706
        %s708 = sand.u32 %s100, 1
        %s709 = smul.addr %s708, 64
        %s710 = scalar_lea.vmem [#allocation8], %s709
        // Predicated region
        $region49: #{tpu_custom_call.1} parent=27 // pred_check
          %p711 = pneg %p110
        $region50: #{tpu_custom_call.1} parent=27 // pred_check_branch
          %713 = sbr.rel (%p711) target = $region52
        $region51: #{tpu_custom_call.1} parent=27 // pred_region
          %s714 = smul.u32 %s27, %s26
          %s715 = smul.u32 8, %s714
          %717 = vsyncadd %s707, 0
          %s718 = smul.addr %s715, 8
          %s719 = scalar_lea.hbm %s2, %s718
          %s720 = sshll.u32 %s710, 4
          %s721 = int_to_ptr.vmem [resolvable:$true] %s720
          %s722 = sshll.u32 %s719, 4
          %s723 = int_to_ptr.hbm [resolvable:$true] %s722
          %728 = dma.vmem_to_hbm [thread:$0]  %s721, 1024, %s723, %s707, 128, 128, 8
        $region52: #{tpu_custom_call.1} parent=27 // pred_fallthru
          _
      $region28: #{tpu_custom_call.1} parent=5 // pred_fallthru
        _
      %p729 = scmp.le.s32.totalorder 2, %s17
      // Predicated region
      $region53: #{tpu_custom_call.1} parent=5 // pred_check
        %p730 = pneg %p729
      $region54: #{tpu_custom_call.1} parent=5 // pred_check_branch
        %732 = sbr.rel (%p730) target = $region56
      $region55: #{tpu_custom_call.1} parent=5 // pred_region
        %s733 = ssub.s32 %s17, 2
        // Predicated region
        $region57: #{tpu_custom_call.1} parent=55 // pred_check
          %p734 = pneg %p116
        $region58: #{tpu_custom_call.1} parent=55 // pred_check_branch
          %736 = sbr.rel (%p734) target = $region60
        $region59: #{tpu_custom_call.1} parent=55 // pred_region
          %s737 = sand.u32 %s101, 1
          %s738 = scalar_lea.sflag [#allocation5], %s737
          %s739 = sand.u32 %s101, 1
          %s740 = smul.addr %s739, 64
          %s741 = scalar_lea.vmem [#allocation8], %s740
          %743 = dma.done %s738, 1024
        $region60: #{tpu_custom_call.1} parent=55 // pred_fallthru
          _
      $region56: #{tpu_custom_call.1} parent=5 // pred_fallthru
        _
    $region6: #{tpu_custom_call.1} parent=1 // loop_footer
      %s21 = sadd.s32 1, %s17
    $region7: #{tpu_custom_call.1} parent=1 // loop_footer_branch
      %16 = sbr.rel target = $region3
    $region8: #{tpu_custom_call.1} parent=1 // loop_exit
      _
    %744 = vsyncpa [#allocation4], 1
    %s745 = scalar_lea.sflag [#allocation4], 1
    %746 = vsyncpa %s745, 1
    %747 = vsyncpa [#allocation7], 1
    %s748 = scalar_lea.sflag [#allocation7], 1
    %749 = vsyncpa %s748, 1
    %750 = vsyncpa [#allocation5], 1
    %s751 = scalar_lea.sflag [#allocation5], 1
    %752 = vsyncpa %s751, 1

</llo_original>
